<compile_context>
chip_gen: v7x
topology: tpu7x:2x2x1
jax: 0.10.0
libtpu: 0.0.40
codegen_flags: <defaults>
</compile_context>

<pallas_src>
import functools

import jax
import jax.numpy as jnp
from jax.experimental import pallas as pl
from jax.experimental.pallas import tpu as pltpu


# ---------------------------------------------------------------------------
# Kernel 1: batched MLP. x tile [TB, D_in]; weights VMEM-resident, bf16 on the MXU,
# f32 accumulation; writes the pre-softmax logits ("hidden" in the PyTorch module).
# ---------------------------------------------------------------------------
def mlp_kernel(x_ref, w1_ref, b1_ref, w2_ref, b2_ref, w3_ref, b3_ref, hidden_ref):
    x = x_ref[...].astype(jnp.bfloat16)                                    # [TB, D_in]

    # fc1 + relu
    h1 = jnp.dot(x, w1_ref[...], preferred_element_type=jnp.float32) + b1_ref[...]
    h1 = jnp.maximum(h1, 0.0).astype(jnp.bfloat16)

    # fc2 + relu
    h2 = jnp.dot(h1, w2_ref[...], preferred_element_type=jnp.float32) + b2_ref[...]
    h2 = jnp.maximum(h2, 0.0).astype(jnp.bfloat16)

    # TODO(synk): nn.Dropout is identity in eval mode; training-mode stochastic
    # dropout (pltpu.prng_random_bits mask + 1/(1-p) scale) is not applied here.

    # fc3 -> logits
    logits = jnp.dot(h2, w3_ref[...], preferred_element_type=jnp.float32) + b3_ref[...]
    hidden_ref[...] = logits.astype(hidden_ref.dtype)


# ---------------------------------------------------------------------------
# Kernel 2: numerically-stable softmax over dim=0 (batch axis), full [B, C] block.
# Kept separate so the MLP pass can be B-tiled without computing a per-tile softmax.
# ---------------------------------------------------------------------------
def softmax_dim0_kernel(hidden_ref, out_ref):
    z = hidden_ref[...]                                                    # [B, C] f32
    m = jnp.max(z, axis=0, keepdims=True)
    e = jnp.exp(z - m)
    denom = jnp.sum(e, axis=0, keepdims=True)
    out_ref[...] = (e * pl.reciprocal(denom, approx=False)).astype(out_ref.dtype)


def prepare_params(w1, b1, w2, b2, w3, b3):
    """One-time glue (call at param creation, NOT per forward):
    PyTorch-layout [out, in] weights -> [in, out] bf16 (native MXU rate);
    biases -> [1, out] f32 (added to the f32 accumulator)."""
    return (
        w1.T.astype(jnp.bfloat16), b1.reshape(1, -1).astype(jnp.float32),
        w2.T.astype(jnp.bfloat16), b2.reshape(1, -1).astype(jnp.float32),
        w3.T.astype(jnp.bfloat16), b3.reshape(1, -1).astype(jnp.float32),
    )


def jdda_ff(x, params, *, block_b=512):
    """x: [B, D_in] f32; params: output of prepare_params(). Returns (softmax(out, dim=0), hidden)."""
    w1t, b1, w2t, b2, w3t, b3 = params
    B, D_in = x.shape
    H = w1t.shape[1]
    C = w3t.shape[1]

    # Batch tile: full B if it fits the requested tile, else a multiple of 8 sublanes.
    if block_b >= B:
        tb = B
    else:
        tb = max(8, (block_b // 8) * 8)
    nb = pl.cdiv(B, tb)

    const = lambda shape: pl.BlockSpec(shape, lambda i: (0, 0))  # VMEM-resident weights

    hidden = pl.pallas_call(
        mlp_kernel,
        out_shape=jax.ShapeDtypeStruct((B, C), jnp.float32),
        grid=(nb,),
        in_specs=[
            pl.BlockSpec((tb, D_in), lambda i: (i, 0)),   # x: tiled over batch
            const((D_in, H)), const((1, H)),              # fc1
            const((H, H)),    const((1, H)),              # fc2
            const((H, C)),    const((1, C)),              # fc3
        ],
        out_specs=pl.BlockSpec((tb, C), lambda i: (i, 0)),
        compiler_params=pltpu.CompilerParams(
            dimension_semantics=("parallel",),            # shard batch tiles across TCs (v7x)
        ),
    )(x, w1t, b1, w2t, b2, w3t, b3)

    out = pl.pallas_call(
        softmax_dim0_kernel,
        out_shape=jax.ShapeDtypeStruct((B, C), jnp.float32),
        grid=(),
        in_specs=[pl.BlockSpec((B, C), lambda: (0, 0))],
        out_specs=pl.BlockSpec((B, C), lambda: (0, 0)),
    )(hidden)

    return out, hidden


def reference(x, w1, b1, w2, b2, w3, b3):
    h1 = jnp.maximum(x @ w1.T + b1, 0.0)
    h2 = jnp.maximum(h1 @ w2.T + b2, 0.0)
    logits = h2 @ w3.T + b3
    return jax.nn.softmax(logits, axis=0), logits


if __name__ == "__main__":
    B, D_in, H, C = 64, 32, 32, 16

    key = jax.random.PRNGKey(0)
    ks = jax.random.split(key, 7)

    # Deterministic, PyTorch-Linear-like uniform init: U(-1/sqrt(fan_in), 1/sqrt(fan_in))
    def uinit(k, shape, fan_in):
        bound = 1.0 / jnp.sqrt(fan_in)
        return jax.random.uniform(k, shape, jnp.float32, -bound, bound)

    x  = jax.random.normal(ks[0], (B, D_in), jnp.float32)
    w1 = uinit(ks[1], (H, D_in), D_in)
    b1 = uinit(ks[2], (H,), D_in)
    w2 = uinit(ks[3], (H, H), H)
    b2 = uinit(ks[4], (H,), H)
    w3 = uinit(ks[5], (C, H), H)
    b3 = uinit(ks[6], (C,), H)

    # One-time parameter preparation (transpose + bf16 cast) — outside the call path.
    params = prepare_params(w1, b1, w2, b2, w3, b3)

    # Small block_b so the batch grid has several tiles and the pipelined path is exercised.
    fwd = jax.jit(functools.partial(jdda_ff, block_b=16))
    out, hidden = fwd(x, params)
    jax.block_until_ready((out, hidden))

    ref_out, ref_hidden = reference(x, w1, b1, w2, b2, w3, b3)
    # bf16 MXU operands (f32 accumulation) vs. pure-f32 reference -> loose tolerance.
    assert jnp.allclose(hidden, ref_hidden, atol=5e-2, rtol=5e-2), "hidden mismatch"
    assert jnp.allclose(out, ref_out, atol=5e-2, rtol=5e-2), "softmax out mismatch"
    # Softmax itself runs in f32: columns must sum to 1 tightly.
    assert jnp.allclose(jnp.sum(out, axis=0), 1.0, atol=1e-5), "softmax not normalized"

    print("KERNEL_OK")
</pallas_src>

<mosaic_0001>
module attributes {stable_mosaic.version = 11 : i64} {
  func.func @mlp_kernel(%arg0: i32, %arg1: memref<16x32xf32, #tpu.memory_space<vmem>>, %arg2: memref<32x32xbf16, #tpu.memory_space<vmem>>, %arg3: memref<1x32xf32, #tpu.memory_space<vmem>>, %arg4: memref<32x32xbf16, #tpu.memory_space<vmem>>, %arg5: memref<1x32xf32, #tpu.memory_space<vmem>>, %arg6: memref<32x16xbf16, #tpu.memory_space<vmem>>, %arg7: memref<1x16xf32, #tpu.memory_space<vmem>>, %arg8: memref<16x16xf32, #tpu.memory_space<vmem>>) attributes {dimension_semantics = [#tpu.dimension_semantics<parallel>], iteration_bounds = array<i64: 4>, scalar_prefetch = 0 : i64, scratch_operands = 0 : i64, tpu.core_type = #tpu.core_type<tc>, window_params = [{transform_indices = @transform_0, window_bounds = array<i64: 16, 32>}, {pipeline_mode = #tpu.pipeline_mode<synchronous>, transform_indices = @transform_1, window_bounds = array<i64: 32, 32>}, {pipeline_mode = #tpu.pipeline_mode<synchronous>, transform_indices = @transform_2, window_bounds = array<i64: 1, 32>}, {pipeline_mode = #tpu.pipeline_mode<synchronous>, transform_indices = @transform_3, window_bounds = array<i64: 32, 32>}, {pipeline_mode = #tpu.pipeline_mode<synchronous>, transform_indices = @transform_4, window_bounds = array<i64: 1, 32>}, {pipeline_mode = #tpu.pipeline_mode<synchronous>, transform_indices = @transform_5, window_bounds = array<i64: 32, 16>}, {pipeline_mode = #tpu.pipeline_mode<synchronous>, transform_indices = @transform_6, window_bounds = array<i64: 1, 16>}, {transform_indices = @transform_7, window_bounds = array<i64: 16, 16>}]} {
    %c0 = arith.constant 0 : index
    %c0_0 = arith.constant 0 : index
    %0 = vector.load %arg1[%c0, %c0_0] : memref<16x32xf32, #tpu.memory_space<vmem>>, vector<16x32xf32>
    %1 = arith.truncf %0 : vector<16x32xf32> to vector<16x32xbf16>
    %c0_1 = arith.constant 0 : index
    %c0_2 = arith.constant 0 : index
    %2 = vector.load %arg2[%c0_1, %c0_2] : memref<32x32xbf16, #tpu.memory_space<vmem>>, vector<32x32xbf16>
    %cst = arith.constant dense<0.000000e+00> : vector<16x32xf32>
    %3 = tpu.matmul %1, %2, %cst {dimension_numbers = #tpu.dot_dimension_numbers<[1], [0], [0], [1], [0, 0, 1, 1], [], []>} : vector<16x32xbf16>, vector<32x32xbf16>, vector<16x32xf32> -> vector<16x32xf32>
    %c0_3 = arith.constant 0 : index
    %c0_4 = arith.constant 0 : index
    %4 = vector.load %arg3[%c0_3, %c0_4] : memref<1x32xf32, #tpu.memory_space<vmem>>, vector<1x32xf32>
    %5 = vector.broadcast %4 : vector<1x32xf32> to vector<16x32xf32>
    %6 = arith.addf %3, %5 : vector<16x32xf32>
    %cst_5 = arith.constant 0.000000e+00 : f32
    %7 = vector.broadcast %cst_5 : f32 to vector<16x32xf32>
    %8 = arith.maximumf %6, %7 : vector<16x32xf32>
    %9 = arith.truncf %8 : vector<16x32xf32> to vector<16x32xbf16>
    %c0_6 = arith.constant 0 : index
    %c0_7 = arith.constant 0 : index
    %10 = vector.load %arg4[%c0_6, %c0_7] : memref<32x32xbf16, #tpu.memory_space<vmem>>, vector<32x32xbf16>
    %cst_8 = arith.constant dense<0.000000e+00> : vector<16x32xf32>
    %11 = tpu.matmul %9, %10, %cst_8 {dimension_numbers = #tpu.dot_dimension_numbers<[1], [0], [0], [1], [0, 0, 1, 1], [], []>} : vector<16x32xbf16>, vector<32x32xbf16>, vector<16x32xf32> -> vector<16x32xf32>
    %c0_9 = arith.constant 0 : index
    %c0_10 = arith.constant 0 : index
    %12 = vector.load %arg5[%c0_9, %c0_10] : memref<1x32xf32, #tpu.memory_space<vmem>>, vector<1x32xf32>
    %13 = vector.broadcast %12 : vector<1x32xf32> to vector<16x32xf32>
    %14 = arith.addf %11, %13 : vector<16x32xf32>
    %cst_11 = arith.constant 0.000000e+00 : f32
    %15 = vector.broadcast %cst_11 : f32 to vector<16x32xf32>
    %16 = arith.maximumf %14, %15 : vector<16x32xf32>
    %17 = arith.truncf %16 : vector<16x32xf32> to vector<16x32xbf16>
    %c0_12 = arith.constant 0 : index
    %c0_13 = arith.constant 0 : index
    %18 = vector.load %arg6[%c0_12, %c0_13] : memref<32x16xbf16, #tpu.memory_space<vmem>>, vector<32x16xbf16>
    %cst_14 = arith.constant dense<0.000000e+00> : vector<16x16xf32>
    %19 = tpu.matmul %17, %18, %cst_14 {dimension_numbers = #tpu.dot_dimension_numbers<[1], [0], [0], [1], [0, 0, 1, 1], [], []>} : vector<16x32xbf16>, vector<32x16xbf16>, vector<16x16xf32> -> vector<16x16xf32>
    %c0_15 = arith.constant 0 : index
    %c0_16 = arith.constant 0 : index
    %20 = vector.load %arg7[%c0_15, %c0_16] : memref<1x16xf32, #tpu.memory_space<vmem>>, vector<1x16xf32>
    %21 = vector.broadcast %20 : vector<1x16xf32> to vector<16x16xf32>
    %22 = arith.addf %19, %21 : vector<16x16xf32>
    %c0_17 = arith.constant 0 : index
    %c0_18 = arith.constant 0 : index
    %23 = vector.load %arg8[%c0_17, %c0_18] : memref<16x16xf32, #tpu.memory_space<vmem>>, vector<16x16xf32>
    tpu.vector_store %arg8[%c0_17, %c0_18], %22 {strides = array<i32>} : memref<16x16xf32, #tpu.memory_space<vmem>>, vector<16x16xf32>,
    return
  }
  func.func @transform_0(%arg0: i32) -> (i32, i32) {
    %c0_i32 = arith.constant 0 : i32
    %c0_i32_0 = arith.constant 0 : i32
    return %arg0, %c0_i32 : i32, i32
  }
  func.func @transform_1(%arg0: i32) -> (i32, i32) {
    %c0_i32 = arith.constant 0 : i32
    %c0_i32_0 = arith.constant 0 : i32
    %c0_i32_1 = arith.constant 0 : i32
    return %c0_i32, %c0_i32_0 : i32, i32
  }
  func.func @transform_2(%arg0: i32) -> (i32, i32) {
    %c0_i32 = arith.constant 0 : i32
    %c0_i32_0 = arith.constant 0 : i32
    %c0_i32_1 = arith.constant 0 : i32
    return %c0_i32, %c0_i32_0 : i32, i32
  }
  func.func @transform_3(%arg0: i32) -> (i32, i32) {
    %c0_i32 = arith.constant 0 : i32
    %c0_i32_0 = arith.constant 0 : i32
    %c0_i32_1 = arith.constant 0 : i32
    return %c0_i32, %c0_i32_0 : i32, i32
  }
  func.func @transform_4(%arg0: i32) -> (i32, i32) {
    %c0_i32 = arith.constant 0 : i32
    %c0_i32_0 = arith.constant 0 : i32
    %c0_i32_1 = arith.constant 0 : i32
    return %c0_i32, %c0_i32_0 : i32, i32
  }
  func.func @transform_5(%arg0: i32) -> (i32, i32) {
    %c0_i32 = arith.constant 0 : i32
    %c0_i32_0 = arith.constant 0 : i32
    %c0_i32_1 = arith.constant 0 : i32
    return %c0_i32, %c0_i32_0 : i32, i32
  }
  func.func @transform_6(%arg0: i32) -> (i32, i32) {
    %c0_i32 = arith.constant 0 : i32
    %c0_i32_0 = arith.constant 0 : i32
    %c0_i32_1 = arith.constant 0 : i32
    return %c0_i32, %c0_i32_0 : i32, i32
  }
  func.func @transform_7(%arg0: i32) -> (i32, i32) {
    %c0_i32 = arith.constant 0 : i32
    %c0_i32_0 = arith.constant 0 : i32
    return %arg0, %c0_i32 : i32, i32
  }
}

module attributes {stable_mosaic.version = 11 : i64} {
  func.func @softmax_dim0_kernel(%arg0: memref<64x16xf32, #tpu.memory_space<vmem>>, %arg1: memref<64x16xf32, #tpu.memory_space<vmem>>) attributes {dimension_semantics = [], scalar_prefetch = 0 : i64, scratch_operands = 0 : i64, tpu.core_type = #tpu.core_type<tc>} {
    %c0 = arith.constant 0 : index
    %c0_0 = arith.constant 0 : index
    %0 = vector.load %arg0[%c0, %c0_0] : memref<64x16xf32, #tpu.memory_space<vmem>>, vector<64x16xf32>
    %cst = arith.constant dense<0xFF800000> : vector<16xf32>
    %1 = vector.multi_reduction <maximumf>, %0, %cst [0] : vector<64x16xf32> to vector<16xf32>
    %2 = vector.shape_cast %1 : vector<16xf32> to vector<1x16xf32>
    %3 = vector.broadcast %2 : vector<1x16xf32> to vector<64x16xf32>
    %4 = arith.subf %0, %3 : vector<64x16xf32>
    %5 = math.exp %4 : vector<64x16xf32>
    %cst_1 = arith.constant dense<0.000000e+00> : vector<16xf32>
    %6 = vector.multi_reduction <add>, %5, %cst_1 [0] : vector<64x16xf32> to vector<16xf32>
    %7 = vector.shape_cast %6 : vector<16xf32> to vector<1x16xf32>
    %8 = tpu.reciprocal %7 : vector<1x16xf32> -> vector<1x16xf32>
    %9 = vector.broadcast %8 : vector<1x16xf32> to vector<64x16xf32>
    %10 = arith.mulf %5, %9 : vector<64x16xf32>
    %c0_2 = arith.constant 0 : index
    %c0_3 = arith.constant 0 : index
    %11 = vector.load %arg1[%c0_2, %c0_3] : memref<64x16xf32, #tpu.memory_space<vmem>>, vector<64x16xf32>
    tpu.vector_store %arg1[%c0_2, %c0_3], %10 {strides = array<i32>} : memref<64x16xf32, #tpu.memory_space<vmem>>, vector<64x16xf32>,
    return
  }
}

</mosaic_0001>

<llo_original>
// kernel: jdda_ff.3
$region0: #{jdda_ff.3}
  #allocation0 [shape = 'u32[]', space=smem, size = 0x4, offset = 0x4, fixed_abs, tag = 'smem constant byte address 0x4 - core index']
  #allocation1 [shape = 'u32[144,128]{1,0:T(1,128)}', space=vmem, size = 0x12000, scoped, tag = 'internal scratch']
  %s0 = inlined_call_operand.vmem [shape: f32[64,16], index: 0, kind: input, shape index: {}]
  %s1 = inlined_call_operand.vmem [shape: f32[64,16], index: 1, kind: output, shape index: {}]
  %s2 = sld [smem:[#allocation0]]
  $region14: #{jdda_ff.3} parent=0
    _
  %s4 = ssub.s32 1, %s2
  %s5 = scalar_select 0, %s4, %s2
  // Predicated region
  $region2: #{jdda_ff.3} parent=0 // pred_check
    _
  $region3: #{jdda_ff.3} parent=0 // pred_check_branch
    %7 = sbr.rel (0) target = $region5
  $region4: #{jdda_ff.3} parent=0 // pred_region
    _
  $region5: #{jdda_ff.3} parent=0 // pred_fallthru
    _
  %v8 = vld [vmem:[%s0] sm:$0xff]
  %v9 = vld [vmem:[%s0 + $0x8] sm:$0xff]
  %v10 = vld [vmem:[%s0 + $0x10] sm:$0xff]
  %v11 = vld [vmem:[%s0 + $0x18] sm:$0xff]
  %v12 = vld [vmem:[%s0 + $0x20] sm:$0xff]
  %v13 = vld [vmem:[%s0 + $0x28] sm:$0xff]
  %v14 = vld [vmem:[%s0 + $0x30] sm:$0xff]
  %v15 = vld [vmem:[%s0 + $0x38] sm:$0xff]
  %vm16 = vcmask 130048
  %v17 = vsel %vm16, %v8, -inf
  %v18 = vsel %vm16, %v9, -inf
  %v19 = vsel %vm16, %v10, -inf
  %v20 = vsel %vm16, %v11, -inf
  %v21 = vsel %vm16, %v12, -inf
  %v22 = vmax.f32 %v17, %v21
  %v23 = vsel %vm16, %v13, -inf
  %v24 = vmax.f32 %v18, %v23
  %v25 = vsel %vm16, %v14, -inf
  %v26 = vmax.f32 %v19, %v25
  %v27 = vsel %vm16, %v15, -inf
  %v28 = vmax.f32 %v20, %v27
  %v29 = vmax.f32 %v22, %v24
  %v30 = vmax.f32 %v26, %v28
  %v31 = vmax.f32 %v29, %v30
  %v32 = vrot.slane %v31, 4
  %v33 = vmax.f32 %v31, %v32
  %v34 = vrot.slane %v33, 2
  %v35 = vmax.f32 %v33, %v34
  %v36 = vrot.slane %v35, 1
  %v37 = vmax.f32 %v35, %v36
  %v38 = vsub.f32 %v8, %v37
  %v39 = vsub.f32 %v9, %v37
  %v40 = vsub.f32 %v10, %v37
  %v41 = vsub.f32 %v11, %v37
  %v42 = vsub.f32 %v12, %v37
  %v43 = vsub.f32 %v13, %v37
  %v44 = vsub.f32 %v14, %v37
  %v45 = vsub.f32 %v15, %v37
  %v46 = vmul.f32 %v38, 1.442695
  %v47 = vpow.pop %v46
  %v48 = vmul.f32 %v39, 1.442695
  %v49 = vpow.pop %v48
  %v50 = vmul.f32 %v40, 1.442695
  %v51 = vpow.pop %v50
  %v52 = vmul.f32 %v41, 1.442695
  %v53 = vpow.pop %v52
  %v54 = vmul.f32 %v42, 1.442695
  %v55 = vpow.pop %v54
  %v56 = vmul.f32 %v43, 1.442695
  %v57 = vpow.pop %v56
  %v58 = vmul.f32 %v44, 1.442695
  %v59 = vpow.pop %v58
  %v60 = vmul.f32 %v45, 1.442695
  %v61 = vpow.pop %v60
  %v62 = vsel %vm16, %v47, 0.0
  %v63 = vsel %vm16, %v49, 0.0
  %v64 = vadd.f32 %v62, %v63
  %v65 = vsel %vm16, %v51, 0.0
  %v66 = vadd.f32 %v64, %v65
  %v67 = vsel %vm16, %v53, 0.0
  %v68 = vadd.f32 %v66, %v67
  %v69 = vsel %vm16, %v55, 0.0
  %v70 = vadd.f32 %v68, %v69
  %v71 = vsel %vm16, %v57, 0.0
  %v72 = vadd.f32 %v70, %v71
  %v73 = vsel %vm16, %v59, 0.0
  %v74 = vadd.f32 %v72, %v73
  %v75 = vsel %vm16, %v61, 0.0
  %v76 = vadd.f32 %v74, %v75
  %v77 = vrot.slane %v76, 4
  %v78 = vadd.f32 %v76, %v77
  %v79 = vrot.slane %v78, 2
  %v80 = vadd.f32 %v78, %v79
  %v81 = vrot.slane %v80, 1
  %v82 = vadd.f32 %v80, %v81
  %v83 = vrcp.pop %v82
  %v84 = vmul.f32 %v47, %v83
  %v85 = vmul.f32 %v49, %v83
  %v86 = vmul.f32 %v51, %v83
  %v87 = vmul.f32 %v53, %v83
  %v88 = vmul.f32 %v55, %v83
  %v89 = vmul.f32 %v57, %v83
  %v90 = vmul.f32 %v59, %v83
  %v91 = vmul.f32 %v61, %v83
  %92 = vst.msk [vmem:[%s1] sm:$0xff] %vm16, %v84
  %93 = vst.msk [vmem:[%s1 + $0x8] sm:$0xff] %vm16, %v85
  %94 = vst.msk [vmem:[%s1 + $0x10] sm:$0xff] %vm16, %v86
  %95 = vst.msk [vmem:[%s1 + $0x18] sm:$0xff] %vm16, %v87
  %96 = vst.msk [vmem:[%s1 + $0x20] sm:$0xff] %vm16, %v88
  %97 = vst.msk [vmem:[%s1 + $0x28] sm:$0xff] %vm16, %v89
  %98 = vst.msk [vmem:[%s1 + $0x30] sm:$0xff] %vm16, %v90
  %99 = vst.msk [vmem:[%s1 + $0x38] sm:$0xff] %vm16, %v91
  // Predicated region
  $region6: #{jdda_ff.3} parent=0 // pred_check
    _
  $region7: #{jdda_ff.3} parent=0 // pred_check_branch
    %101 = sbr.rel (0) target = $region9
  $region8: #{jdda_ff.3} parent=0 // pred_region
    _
  $region9: #{jdda_ff.3} parent=0 // pred_fallthru
    _
  // Predicated region
  $region10: #{jdda_ff.3} parent=0 // pred_check
    _
  $region11: #{jdda_ff.3} parent=0 // pred_check_branch
    %103 = sbr.rel (0) target = $region13
  $region12: #{jdda_ff.3} parent=0 // pred_region
    _
  $region13: #{jdda_ff.3} parent=0 // pred_fallthru
    _

// kernel: jdda_ff.2
$region0: #{jdda_ff.2}
  #allocation0 [shape = 'u32[]', space=smem, size = 0x4, offset = 0x4, fixed_abs, tag = 'smem constant byte address 0x4 - core index']
  #allocation1 [shape = 'u32[144,128]{1,0:T(1,128)}', space=vmem, size = 0x12000, scoped, tag = 'internal scratch']
  %s0 = inlined_call_operand.vmem [shape: f32[64,32], index: 0, kind: input, shape index: {}]
  %s1 = inlined_call_operand.vmem [shape: bf16[32,32], index: 1, kind: input, shape index: {}]
  %s2 = inlined_call_operand.vmem [shape: f32[1,32], index: 2, kind: input, shape index: {}]
  %s3 = inlined_call_operand.vmem [shape: bf16[32,32], index: 3, kind: input, shape index: {}]
  %s4 = inlined_call_operand.vmem [shape: f32[1,32], index: 4, kind: input, shape index: {}]
  %s5 = inlined_call_operand.vmem [shape: bf16[32,16], index: 5, kind: input, shape index: {}]
  %s6 = inlined_call_operand.vmem [shape: f32[1,16], index: 6, kind: input, shape index: {}]
  %s7 = inlined_call_operand.vmem [shape: f32[64,16], index: 7, kind: output, shape index: {}]
  %s8 = sld [smem:[#allocation0]]
  $region61: #{jdda_ff.2} parent=0
    _
  %s10 = ssub.s32 1, %s8
  %s11 = scalar_select 0, %s10, %s8
  loop: start=0, step=1, limit=6
  $region2: #{jdda_ff.2} parent=0 // loop_pre_header
    _
  $region3: #{jdda_ff.2} parent=0 // loop_header
    %s13 = sphi 0, %s17
    %p14 = scmp.ge.s32.totalorder %s13, 6
    %s23 = sphi 0, %s25
    %s26 = sphi 0, %s23
    %s27 = sphi 0, %s26
    %s43 = sphi 0, %s27
    %s47 = sphi 0, %s47
    %s49 = sphi 0, %s47
    %s50 = sphi 0, %s49
    %s64 = sphi 0, %s50
    %s68 = sphi 0, %s68
    %s70 = sphi 0, %s68
    %s71 = sphi 0, %s70
    %s85 = sphi 0, %s71
    %s89 = sphi 0, %s89
    %s91 = sphi 0, %s89
    %s92 = sphi 0, %s91
    %s106 = sphi 0, %s92
    %s110 = sphi 0, %s110
    %s112 = sphi 0, %s110
    %s113 = sphi 0, %s112
    %s127 = sphi 0, %s113
    %s131 = sphi 0, %s131
    %s133 = sphi 0, %s131
    %s134 = sphi 0, %s133
    %s148 = sphi 0, %s134
    %s152 = sphi 0, %s152
    %s154 = sphi 0, %s152
    %s155 = sphi 0, %s154
    %s169 = sphi 0, %s155
    %s175 = sphi 0, %s177
    %s178 = sphi 0, %s175
    %s179 = sphi 0, %s178
    %s195 = sphi 0, %s179
  $region4: #{jdda_ff.2} parent=0 // loop_header_branch
    %16 = sbr.rel (%p14) target = $region8
  $region5: #{jdda_ff.2} parent=0 // loop_body
    %s18 = ssub.s32 %s13, 1
    %s19 = ssub.s32 %s13, 2
    %s20 = sadd.s32 %s13, 1
    %s21 = ssub.s32 %s13, %s20
    %p22 = scmp.eq.s32.totalorder %s21, 0
    %s24 = sadd.s32 %s23, 1
    %s25 = scalar_select %p22, %s23, %s24
    %p28 = pneg %p22
    %p29 = scmp.eq.s32.totalorder %s13, 3
    %p30 = por %p28, %p29
    %p31 = scmp.ne.s32.totalorder %s23, %s26
    %p32 = scmp.eq.s32.totalorder %s13, 0
    %p33 = por %p31, %p32
    %p34 = scmp.ne.s32.totalorder %s23, %s26
    %p35 = scmp.eq.s32.totalorder %s18, 3
    %p36 = por %p34, %p35
    %p37 = scmp.ne.s32.totalorder %s26, %s27
    %p38 = scmp.eq.s32.totalorder %s18, 0
    %p39 = por %p37, %p38
    %p40 = scmp.ne.s32.totalorder %s26, %s27
    %p41 = scmp.eq.s32.totalorder %s19, 3
    %p42 = por %p40, %p41
    %p44 = scmp.ne.s32.totalorder %s27, %s43
    %p45 = scmp.eq.s32.totalorder %s19, 0
    %p46 = por %p44, %p45
    %s48 = sadd.s32 %s47, 1
    %p51 = scmp.eq.s32.totalorder %s13, 3
    %p52 = scmp.ne.s32.totalorder %s47, %s49
    %p53 = scmp.eq.s32.totalorder %s13, 0
    %p54 = por %p52, %p53
    %p55 = scmp.ne.s32.totalorder %s47, %s49
    %p56 = scmp.eq.s32.totalorder %s18, 3
    %p57 = por %p55, %p56
    %p58 = scmp.ne.s32.totalorder %s49, %s50
    %p59 = scmp.eq.s32.totalorder %s18, 0
    %p60 = por %p58, %p59
    %p61 = scmp.ne.s32.totalorder %s49, %s50
    %p62 = scmp.eq.s32.totalorder %s19, 3
    %p63 = por %p61, %p62
    %p65 = scmp.ne.s32.totalorder %s50, %s64
    %p66 = scmp.eq.s32.totalorder %s19, 0
    %p67 = por %p65, %p66
    %s69 = sadd.s32 %s68, 1
    %p72 = scmp.eq.s32.totalorder %s13, 3
    %p73 = scmp.ne.s32.totalorder %s68, %s70
    %p74 = scmp.eq.s32.totalorder %s13, 0
    %p75 = por %p73, %p74
    %p76 = scmp.ne.s32.totalorder %s68, %s70
    %p77 = scmp.eq.s32.totalorder %s18, 3
    %p78 = por %p76, %p77
    %p79 = scmp.ne.s32.totalorder %s70, %s71
    %p80 = scmp.eq.s32.totalorder %s18, 0
    %p81 = por %p79, %p80
    %p82 = scmp.ne.s32.totalorder %s70, %s71
    %p83 = scmp.eq.s32.totalorder %s19, 3
    %p84 = por %p82, %p83
    %p86 = scmp.ne.s32.totalorder %s71, %s85
    %p87 = scmp.eq.s32.totalorder %s19, 0
    %p88 = por %p86, %p87
    %s90 = sadd.s32 %s89, 1
    %p93 = scmp.eq.s32.totalorder %s13, 3
    %p94 = scmp.ne.s32.totalorder %s89, %s91
    %p95 = scmp.eq.s32.totalorder %s13, 0
    %p96 = por %p94, %p95
    %p97 = scmp.ne.s32.totalorder %s89, %s91
    %p98 = scmp.eq.s32.totalorder %s18, 3
    %p99 = por %p97, %p98
    %p100 = scmp.ne.s32.totalorder %s91, %s92
    %p101 = scmp.eq.s32.totalorder %s18, 0
    %p102 = por %p100, %p101
    %p103 = scmp.ne.s32.totalorder %s91, %s92
    %p104 = scmp.eq.s32.totalorder %s19, 3
    %p105 = por %p103, %p104
    %p107 = scmp.ne.s32.totalorder %s92, %s106
    %p108 = scmp.eq.s32.totalorder %s19, 0
    %p109 = por %p107, %p108
    %s111 = sadd.s32 %s110, 1
    %p114 = scmp.eq.s32.totalorder %s13, 3
    %p115 = scmp.ne.s32.totalorder %s110, %s112
    %p116 = scmp.eq.s32.totalorder %s13, 0
    %p117 = por %p115, %p116
    %p118 = scmp.ne.s32.totalorder %s110, %s112
    %p119 = scmp.eq.s32.totalorder %s18, 3
    %p120 = por %p118, %p119
    %p121 = scmp.ne.s32.totalorder %s112, %s113
    %p122 = scmp.eq.s32.totalorder %s18, 0
    %p123 = por %p121, %p122
    %p124 = scmp.ne.s32.totalorder %s112, %s113
    %p125 = scmp.eq.s32.totalorder %s19, 3
    %p126 = por %p124, %p125
    %p128 = scmp.ne.s32.totalorder %s113, %s127
    %p129 = scmp.eq.s32.totalorder %s19, 0
    %p130 = por %p128, %p129
    %s132 = sadd.s32 %s131, 1
    %p135 = scmp.eq.s32.totalorder %s13, 3
    %p136 = scmp.ne.s32.totalorder %s131, %s133
    %p137 = scmp.eq.s32.totalorder %s13, 0
    %p138 = por %p136, %p137
    %p139 = scmp.ne.s32.totalorder %s131, %s133
    %p140 = scmp.eq.s32.totalorder %s18, 3
    %p141 = por %p139, %p140
    %p142 = scmp.ne.s32.totalorder %s133, %s134
    %p143 = scmp.eq.s32.totalorder %s18, 0
    %p144 = por %p142, %p143
    %p145 = scmp.ne.s32.totalorder %s133, %s134
    %p146 = scmp.eq.s32.totalorder %s19, 3
    %p147 = por %p145, %p146
    %p149 = scmp.ne.s32.totalorder %s134, %s148
    %p150 = scmp.eq.s32.totalorder %s19, 0
    %p151 = por %p149, %p150
    %s153 = sadd.s32 %s152, 1
    %p156 = scmp.eq.s32.totalorder %s13, 3
    %p157 = scmp.ne.s32.totalorder %s152, %s154
    %p158 = scmp.eq.s32.totalorder %s13, 0
    %p159 = por %p157, %p158
    %p160 = scmp.ne.s32.totalorder %s152, %s154
    %p161 = scmp.eq.s32.totalorder %s18, 3
    %p162 = por %p160, %p161
    %p163 = scmp.ne.s32.totalorder %s154, %s155
    %p164 = scmp.eq.s32.totalorder %s18, 0
    %p165 = por %p163, %p164
    %p166 = scmp.ne.s32.totalorder %s154, %s155
    %p167 = scmp.eq.s32.totalorder %s19, 3
    %p168 = por %p166, %p167
    %p170 = scmp.ne.s32.totalorder %s155, %s169
    %p171 = scmp.eq.s32.totalorder %s19, 0
    %p172 = por %p170, %p171
    %s173 = ssub.s32 %s13, %s20
    %p174 = scmp.eq.s32.totalorder %s173, 0
    %s176 = sadd.s32 %s175, 1
    %s177 = scalar_select %p174, %s175, %s176
    %p180 = pneg %p174
    %p181 = scmp.eq.s32.totalorder %s13, 3
    %p182 = por %p180, %p181
    %p183 = scmp.ne.s32.totalorder %s175, %s178
    %p184 = scmp.eq.s32.totalorder %s13, 0
    %p185 = por %p183, %p184
    %p186 = scmp.ne.s32.totalorder %s175, %s178
    %p187 = scmp.eq.s32.totalorder %s18, 3
    %p188 = por %p186, %p187
    %p189 = scmp.ne.s32.totalorder %s178, %s179
    %p190 = scmp.eq.s32.totalorder %s18, 0
    %p191 = por %p189, %p190
    %p192 = scmp.ne.s32.totalorder %s178, %s179
    %p193 = scmp.eq.s32.totalorder %s19, 3
    %p194 = por %p192, %p193
    %p196 = scmp.ne.s32.totalorder %s179, %s195
    %p197 = scmp.eq.s32.totalorder %s19, 0
    %p198 = por %p196, %p197
    %p199 = scmp.le.s32.totalorder 1, %s13
    %p200 = scmp.lt.s32.totalorder %s13, 5
    %p201 = pnand %p199, %p200
    %p202 = pneg %p201
    // Predicated region
    $region9: #{jdda_ff.2} parent=5 // pred_check
      _
    $region10: #{jdda_ff.2} parent=5 // pred_check_branch
      %204 = sbr.rel (%p201) target = $region12
    $region11: #{jdda_ff.2} parent=5 // pred_region
      %s205 = ssub.s32 %s13, 1
      // Predicated region
      $region13: #{jdda_ff.2} parent=11 // pred_check
        %p206 = pneg %p60
      $region14: #{jdda_ff.2} parent=11 // pred_check_branch
        %208 = sbr.rel (%p206) target = $region16
      $region15: #{jdda_ff.2} parent=11 // pred_region
        _
      $region16: #{jdda_ff.2} parent=11 // pred_fallthru
        _
      // Predicated region
      $region17: #{jdda_ff.2} parent=11 // pred_check
        %p209 = pneg %p81
      $region18: #{jdda_ff.2} parent=11 // pred_check_branch
        %211 = sbr.rel (%p209) target = $region20
      $region19: #{jdda_ff.2} parent=11 // pred_region
        _
      $region20: #{jdda_ff.2} parent=11 // pred_fallthru
        _
      // Predicated region
      $region21: #{jdda_ff.2} parent=11 // pred_check
        %p212 = pneg %p102
      $region22: #{jdda_ff.2} parent=11 // pred_check_branch
        %214 = sbr.rel (%p212) target = $region24
      $region23: #{jdda_ff.2} parent=11 // pred_region
        _
      $region24: #{jdda_ff.2} parent=11 // pred_fallthru
        _
      // Predicated region
      $region25: #{jdda_ff.2} parent=11 // pred_check
        %p215 = pneg %p123
      $region26: #{jdda_ff.2} parent=11 // pred_check_branch
        %217 = sbr.rel (%p215) target = $region28
      $region27: #{jdda_ff.2} parent=11 // pred_region
        _
      $region28: #{jdda_ff.2} parent=11 // pred_fallthru
        _
      // Predicated region
      $region29: #{jdda_ff.2} parent=11 // pred_check
        %p218 = pneg %p144
      $region30: #{jdda_ff.2} parent=11 // pred_check_branch
        %220 = sbr.rel (%p218) target = $region32
      $region31: #{jdda_ff.2} parent=11 // pred_region
        _
      $region32: #{jdda_ff.2} parent=11 // pred_fallthru
        _
      // Predicated region
      $region33: #{jdda_ff.2} parent=11 // pred_check
        %p221 = pneg %p165
      $region34: #{jdda_ff.2} parent=11 // pred_check_branch
        %223 = sbr.rel (%p221) target = $region36
      $region35: #{jdda_ff.2} parent=11 // pred_region
        _
      $region36: #{jdda_ff.2} parent=11 // pred_fallthru
        _
    $region12: #{jdda_ff.2} parent=5 // pred_fallthru
      _
    %p224 = scmp.lt.s32.totalorder %s13, 4
    // Predicated region
    $region37: #{jdda_ff.2} parent=5 // pred_check
      %p225 = pneg %p224
    $region38: #{jdda_ff.2} parent=5 // pred_check_branch
      %227 = sbr.rel (%p225) target = $region40
    $region39: #{jdda_ff.2} parent=5 // pred_region
      // Predicated region
      $region41: #{jdda_ff.2} parent=39 // pred_check
        %p228 = pneg %p33
      $region42: #{jdda_ff.2} parent=39 // pred_check_branch
        %230 = sbr.rel (%p228) target = $region44
      $region43: #{jdda_ff.2} parent=39 // pred_region
        %s231 = smul.u32 2, %s13
        %p232 = scmp.lt.s32.totalorder %s231, 7
        %s233 = scalar_select %p232, %s231, 7
        %s234 = smul.addr %s233, 8
        %s235 = scalar_lea.vmem %s0, %s234
        %s236 = smul.u32 2, %s13
      $region44: #{jdda_ff.2} parent=39 // pred_fallthru
        _
    $region40: #{jdda_ff.2} parent=5 // pred_fallthru
      _
    %p237 = scmp.le.s32.totalorder 1, %s13
    %p238 = scmp.lt.s32.totalorder %s13, 5
    %p239 = pnand %p237, %p238
    %p240 = pneg %p239
    // Predicated region
    $region45: #{jdda_ff.2} parent=5 // pred_check
      _
    $region46: #{jdda_ff.2} parent=5 // pred_check_branch
      %242 = sbr.rel (%p239) target = $region48
    $region47: #{jdda_ff.2} parent=5 // pred_region
      %s243 = ssub.s32 %s13, 1
      %s244 = smul.u32 2, %s18
      %p245 = scmp.lt.s32.totalorder %s244, 7
      %s246 = scalar_select %p245, %s244, 7
      %s247 = smul.addr %s246, 8
      %s248 = scalar_lea.vmem %s0, %s247
      %p249 = pneg %p39
      %p250 = pneg %p36
      %p251 = pneg %p60
      %p252 = pneg %p57
      %p253 = pneg %p81
      %p254 = pneg %p78
      %p255 = pneg %p102
      %p256 = pneg %p99
      %p257 = pneg %p123
      %p258 = pneg %p120
      %p259 = pneg %p144
      %p260 = pneg %p141
      %p261 = pneg %p165
      %p262 = pneg %p162
      %p263 = pneg %p191
      %p264 = pneg %p188
      %s265 = smul.u32 2, %s18
      %p266 = scmp.lt.s32.totalorder %s265, 7
      %s267 = scalar_select %p266, %s265, 7
      %s268 = smul.addr %s267, 8
      %s269 = scalar_lea.vmem %s7, %s268
      %s270 = smul.u32 2, %s18
      %p271 = scmp.lt.s32.totalorder %s270, 7
      %s272 = scalar_select %p271, %s270, 7
      %s273 = smul.addr %s272, 8
      %s274 = scalar_lea.vmem %s0, %s273
      %s275 = smul.u32 2, %s18
      %s276 = smul.u32 2, %s18
      %p277 = scmp.lt.s32.totalorder %s276, 7
      %s278 = scalar_select %p277, %s276, 7
      %s279 = smul.addr %s278, 8
      %s280 = scalar_lea.vmem %s7, %s279
      %s281 = smul.u32 2, %s18
      %v283 = vld [vmem:[%s274] sm:$0xff]
      %v284 = vld [vmem:[%s274 + $0x8] sm:$0xff]
      %v285 = vpack.c.bf16 %v284, %v283
      %v286 = vld [vmem:[%s1] sm:$0xf]
      %v287 = vld [vmem:[%s1 + $0x4] sm:$0xf]
      %v288 = vld [vmem:[%s1 + $0x8] sm:$0xf]
      %v289 = vld [vmem:[%s1 + $0xc] sm:$0xf]
      %v290 = vld [vmem:[%s2] sm:$0x1]
      %v292 = vlaneseq
      %v293 = vshrl.u32 %v292, 7
      %v294 = vsub.s32 0, %v293
      %v295 = vrot.slane %v290, %v294
      %v301 = vunpack.c.l.b16 %v286
      %v302 = vunpack.c.l.b16 %v287
      %v303 = vunpack.c.l.b16 %v288
      %v304 = vunpack.c.l.b16 %v289
      %v305 = vpack.c.b16 %v302, %v301
      %v306 = vpack.c.b16 %v304, %v303
      %vm309 = vcmask 261120
      %v311 = vsel %vm309, %v285, 0
      %313 = vmatprep.subr.bf16.mxu0 0
      %314 = vmatpush1.bf16.msra.mxu0 %v305
      %315 = vmatprep.subr.bf16.mxu0 0
      %316 = vmatpush1.bf16.msra.mxu0 %v306
      %317 = vmatprep.subr.bf16.mxu0 0
      %318 = vmatpush1.bf16.msra.mxu0 0
      %319 = vmatprep.subr.bf16.mxu0 0
      %320 = vmatpush1.bf16.msra.mxu0 0
      %321 = vmatprep.subr.bf16.mxu0 0
      %322 = vmatpush1.bf16.msra.mxu0 0
      %323 = vmatprep.subr.bf16.mxu0 0
      %324 = vmatpush1.bf16.msra.mxu0 0
      %325 = vmatprep.subr.bf16.mxu0 0
      %326 = vmatpush1.bf16.msra.mxu0 0
      %327 = vmatprep.subr.bf16.mxu0 0
      %328 = vmatpush1.bf16.msra.mxu0 0
      %329 = vmatprep.subr.bf16.mxu0 0
      %330 = vmatpush1.bf16.msra.mxu0 0
      %331 = vmatprep.subr.bf16.mxu0 0
      %332 = vmatpush1.bf16.msra.mxu0 0
      %333 = vmatprep.subr.bf16.mxu0 0
      %334 = vmatpush1.bf16.msra.mxu0 0
      %335 = vmatprep.subr.bf16.mxu0 0
      %336 = vmatpush1.bf16.msra.mxu0 0
      %337 = vmatprep.subr.bf16.mxu0 0
      %338 = vmatpush1.bf16.msra.mxu0 0
      %339 = vmatprep.subr.bf16.mxu0 0
      %340 = vmatpush1.bf16.msra.mxu0 0
      %341 = vmatprep.subr.bf16.mxu0 0
      %342 = vmatpush1.bf16.msra.mxu0 0
      %343 = vmatprep.subr.bf16.mxu0 0
      %344 = vmatpush1.bf16.msra.mxu0 0
      %345 = vmatprep.mubr.bf16.mxu0 0
      %346 = vmatmul.mubr.bf16.gmra.mrb[0].mxu0 %v311
      %v347 = vpop.f32.mrb[0].mxu0
      %v348 = vadd.f32 %v295, %v347
      %v349 = vpop.f32.mrb[0].mxu0
      %v350 = vpop.f32.mrb[0].mxu0
      %v351 = vadd.f32 %v295, %v350
      %v352 = vpop.f32.mrb[0].mxu0
      %353 = vdwg.mxu0
      %v354 = vmax.f32 %v348, 0.0
      %v355 = vmax.f32 %v351, 0.0
      %v356 = vpack.c.bf16 %v355, %v354
      %v357 = vld [vmem:[%s3] sm:$0xf]
      %v358 = vld [vmem:[%s3 + $0x4] sm:$0xf]
      %v359 = vld [vmem:[%s3 + $0x8] sm:$0xf]
      %v360 = vld [vmem:[%s3 + $0xc] sm:$0xf]
      %v361 = vld [vmem:[%s4] sm:$0x1]
      %v363 = vlaneseq
      %v364 = vshrl.u32 %v363, 7
      %v365 = vsub.s32 0, %v364
      %v366 = vrot.slane %v361, %v365
      %v372 = vunpack.c.l.b16 %v357
      %v373 = vunpack.c.l.b16 %v358
      %v374 = vunpack.c.l.b16 %v359
      %v375 = vunpack.c.l.b16 %v360
      %v376 = vpack.c.b16 %v373, %v372
      %v377 = vpack.c.b16 %v375, %v374
      %v381 = vsel %vm309, %v356, 0
      %383 = vmatprep.subr.bf16.mxu0 0
      %384 = vmatpush1.bf16.msra.mxu0 %v376
      %385 = vmatprep.subr.bf16.mxu0 0
      %386 = vmatpush1.bf16.msra.mxu0 %v377
      %387 = vmatprep.subr.bf16.mxu0 0
      %388 = vmatpush1.bf16.msra.mxu0 0
      %389 = vmatprep.subr.bf16.mxu0 0
      %390 = vmatpush1.bf16.msra.mxu0 0
      %391 = vmatprep.subr.bf16.mxu0 0
      %392 = vmatpush1.bf16.msra.mxu0 0
      %393 = vmatprep.subr.bf16.mxu0 0
      %394 = vmatpush1.bf16.msra.mxu0 0
      %395 = vmatprep.subr.bf16.mxu0 0
      %396 = vmatpush1.bf16.msra.mxu0 0
      %397 = vmatprep.subr.bf16.mxu0 0
      %398 = vmatpush1.bf16.msra.mxu0 0
      %399 = vmatprep.subr.bf16.mxu0 0
      %400 = vmatpush1.bf16.msra.mxu0 0
      %401 = vmatprep.subr.bf16.mxu0 0
      %402 = vmatpush1.bf16.msra.mxu0 0
      %403 = vmatprep.subr.bf16.mxu0 0
      %404 = vmatpush1.bf16.msra.mxu0 0
      %405 = vmatprep.subr.bf16.mxu0 0
      %406 = vmatpush1.bf16.msra.mxu0 0
      %407 = vmatprep.subr.bf16.mxu0 0
      %408 = vmatpush1.bf16.msra.mxu0 0
      %409 = vmatprep.subr.bf16.mxu0 0
      %410 = vmatpush1.bf16.msra.mxu0 0
      %411 = vmatprep.subr.bf16.mxu0 0
      %412 = vmatpush1.bf16.msra.mxu0 0
      %413 = vmatprep.subr.bf16.mxu0 0
      %414 = vmatpush1.bf16.msra.mxu0 0
      %415 = vmatprep.mubr.bf16.mxu0 0
      %416 = vmatmul.mubr.bf16.gmra.mrb[0].mxu0 %v381
      %v417 = vpop.f32.mrb[0].mxu0
      %v418 = vadd.f32 %v366, %v417
      %v419 = vpop.f32.mrb[0].mxu0
      %v420 = vpop.f32.mrb[0].mxu0
      %v421 = vadd.f32 %v366, %v420
      %v422 = vpop.f32.mrb[0].mxu0
      %423 = vdwg.mxu0
      %v424 = vmax.f32 %v418, 0.0
      %v425 = vmax.f32 %v421, 0.0
      %v426 = vpack.c.bf16 %v425, %v424
      %v427 = vld [vmem:[%s5] sm:$0xf]
      %v428 = vld [vmem:[%s5 + $0x4] sm:$0xf]
      %v429 = vld [vmem:[%s5 + $0x8] sm:$0xf]
      %v430 = vld [vmem:[%s5 + $0xc] sm:$0xf]
      %v431 = vld [vmem:[%s6] sm:$0x1]
      %v433 = vlaneseq
      %v434 = vshrl.u32 %v433, 7
      %v435 = vsub.s32 0, %v434
      %v436 = vrot.slane %v431, %v435
      %v442 = vunpack.c.l.b16 %v427
      %v443 = vunpack.c.l.b16 %v428
      %v444 = vunpack.c.l.b16 %v429
      %v445 = vunpack.c.l.b16 %v430
      %v446 = vpack.c.b16 %v443, %v442
      %v447 = vpack.c.b16 %v445, %v444
      %v451 = vsel %vm309, %v426, 0
      %453 = vmatprep.subr.bf16.mxu0 0
      %454 = vmatpush1.bf16.msra.mxu0 %v446
      %455 = vmatprep.subr.bf16.mxu0 0
      %456 = vmatpush1.bf16.msra.mxu0 %v447
      %457 = vmatprep.subr.bf16.mxu0 0
      %458 = vmatpush1.bf16.msra.mxu0 0
      %459 = vmatprep.subr.bf16.mxu0 0
      %460 = vmatpush1.bf16.msra.mxu0 0
      %461 = vmatprep.subr.bf16.mxu0 0
      %462 = vmatpush1.bf16.msra.mxu0 0
      %463 = vmatprep.subr.bf16.mxu0 0
      %464 = vmatpush1.bf16.msra.mxu0 0
      %465 = vmatprep.subr.bf16.mxu0 0
      %466 = vmatpush1.bf16.msra.mxu0 0
      %467 = vmatprep.subr.bf16.mxu0 0
      %468 = vmatpush1.bf16.msra.mxu0 0
      %469 = vmatprep.subr.bf16.mxu0 0
      %470 = vmatpush1.bf16.msra.mxu0 0
      %471 = vmatprep.subr.bf16.mxu0 0
      %472 = vmatpush1.bf16.msra.mxu0 0
      %473 = vmatprep.subr.bf16.mxu0 0
      %474 = vmatpush1.bf16.msra.mxu0 0
      %475 = vmatprep.subr.bf16.mxu0 0
      %476 = vmatpush1.bf16.msra.mxu0 0
      %477 = vmatprep.subr.bf16.mxu0 0
      %478 = vmatpush1.bf16.msra.mxu0 0
      %479 = vmatprep.subr.bf16.mxu0 0
      %480 = vmatpush1.bf16.msra.mxu0 0
      %481 = vmatprep.subr.bf16.mxu0 0
      %482 = vmatpush1.bf16.msra.mxu0 0
      %483 = vmatprep.subr.bf16.mxu0 0
      %484 = vmatpush1.bf16.msra.mxu0 0
      %485 = vmatprep.mubr.bf16.mxu0 0
      %486 = vmatmul.mubr.bf16.gmra.mrb[0].mxu0 %v451
      %v487 = vpop.f32.mrb[0].mxu0
      %v488 = vadd.f32 %v436, %v487
      %v489 = vpop.f32.mrb[0].mxu0
      %v490 = vpop.f32.mrb[0].mxu0
      %v491 = vadd.f32 %v436, %v490
      %v492 = vpop.f32.mrb[0].mxu0
      %493 = vdwg.mxu0
      %vm494 = vcmask 130048
      %495 = vst.msk [vmem:[%s280] sm:$0xff] %vm494, %v488
      %496 = vst.msk [vmem:[%s280 + $0x8] sm:$0xff] %vm494, %v491
      %s497 = smul.u32 2, %s18
      %p498 = scmp.lt.s32.totalorder %s497, 7
      %s499 = scalar_select %p498, %s497, 7
      %s500 = smul.addr %s499, 8
      %s501 = scalar_lea.vmem %s7, %s500
      // Predicated region
      $region49: #{jdda_ff.2} parent=47 // pred_check
        %p502 = pneg %p188
      $region50: #{jdda_ff.2} parent=47 // pred_check_branch
        %504 = sbr.rel (%p502) target = $region52
      $region51: #{jdda_ff.2} parent=47 // pred_region
        %s505 = smul.u32 2, %s18
      $region52: #{jdda_ff.2} parent=47 // pred_fallthru
        _
    $region48: #{jdda_ff.2} parent=5 // pred_fallthru
      _
    %p506 = scmp.le.s32.totalorder 2, %s13
    // Predicated region
    $region53: #{jdda_ff.2} parent=5 // pred_check
      %p507 = pneg %p506
    $region54: #{jdda_ff.2} parent=5 // pred_check_branch
      %509 = sbr.rel (%p507) target = $region56
    $region55: #{jdda_ff.2} parent=5 // pred_region
      %s510 = ssub.s32 %s13, 2
      // Predicated region
      $region57: #{jdda_ff.2} parent=55 // pred_check
        %p511 = pneg %p194
      $region58: #{jdda_ff.2} parent=55 // pred_check_branch
        %513 = sbr.rel (%p511) target = $region60
      $region59: #{jdda_ff.2} parent=55 // pred_region
        %s514 = smul.u32 2, %s19
        %p515 = scmp.lt.s32.totalorder %s514, 7
        %s516 = scalar_select %p515, %s514, 7
        %s517 = smul.addr %s516, 8
        %s518 = scalar_lea.vmem %s7, %s517
      $region60: #{jdda_ff.2} parent=55 // pred_fallthru
        _
    $region56: #{jdda_ff.2} parent=5 // pred_fallthru
      _
  $region6: #{jdda_ff.2} parent=0 // loop_footer
    %s17 = sadd.s32 1, %s13
  $region7: #{jdda_ff.2} parent=0 // loop_footer_branch
    %12 = sbr.rel target = $region3
  $region8: #{jdda_ff.2} parent=0 // loop_exit
    _

</llo_original>
